<compile_context>
chip_gen: v6e
topology: v6e:2x2x1
jax: 0.10.0
libtpu: 0.0.40
codegen_flags: <defaults>
</compile_context>

<pallas_src>
import jax
import jax.numpy as jnp
from jax.experimental import pallas as pl
from jax.experimental.pallas import tpu as pltpu

GN_EPS = 1e-5  # torch GroupNorm default eps
LN_EPS = 1e-5  # torch LayerNorm default eps


def _local_module_kernel(x_ref, m_ref, w1t_ref, p_ref, sg_ref, sgt_ref, o_ref):
    # x_ref block: (Bt, T, D); m_ref block: (Bt, T, 1) float {0,1}
    Bt, T, D = x_ref.shape
    M = Bt * T

    # ---- per-channel params packed into one (16, D) array ----
    dw0 = p_ref[0:1, :]   # depthwise tap for h[t-1]
    dw1 = p_ref[1:2, :]   # depthwise tap for h[t]
    dw2 = p_ref[2:3, :]   # depthwise tap for h[t+1]
    b1 = p_ref[3:4, :]    # pointwise conv bias
    db = p_ref[4:5, :]    # depthwise conv bias
    gn_g = p_ref[5:6, :]
    gn_b = p_ref[6:7, :]
    ln_g = p_ref[7:8, :]
    ln_b = p_ref[8:9, :]

    # ---- mask padded positions (x[~mask] = 0) ----
    xm = x_ref[...] * m_ref[...]                      # (Bt, T, D)
    x2 = xm.reshape(M, D)                             # flatten samples into MXU rows

    # ---- Conv1d(kernel=1): pointwise channel mix = (Bt*T, D) @ (D, D) ----
    h = jnp.dot(x2.astype(jnp.bfloat16), w1t_ref[...],
                preferred_element_type=jnp.float32) + b1        # (M, D) f32

    # ---- Conv1d(kernel=3, pad=1, groups=D): depthwise via shifted adds ----
    # Zeroing rows with t==0 / t==T-1 both implements the zero padding and stops
    # neighbouring samples from leaking into each other in the flattened slab.
    t_idx = jax.lax.broadcasted_iota(jnp.int32, (M, 1), 0) % T
    h_prev = jnp.where(t_idx == 0, 0.0, pltpu.roll(h, shift=1, axis=0))          # h[t-1]
    h_next = jnp.where(t_idx == T - 1, 0.0, pltpu.roll(h, shift=M - 1, axis=0))  # h[t+1]
    h2 = h_prev * dw0 + h * dw1 + h_next * dw2 + db             # (M, D)

    # ---- GroupNorm statistics: per-sample over (T, channels-in-group) ----
    h3 = h2.reshape(Bt, T, D)
    sum_c = jnp.sum(h3, axis=1)                                  # (Bt, D)
    sumsq_c = jnp.sum(h3 * h3, axis=1)                           # (Bt, D)
    # Stack into one (2*Bt, D) slab so the tiny group matmuls are pushed once.
    stats = jnp.concatenate([sum_c, sumsq_c], axis=0)            # (2*Bt, D)
    gstats = jnp.dot(
        jnp.dot(stats, sg_ref[...], preferred_element_type=jnp.float32),
        sgt_ref[...], preferred_element_type=jnp.float32)        # (2*Bt, D)
    mean_c = gstats[:Bt]                                          # (Bt, D)
    esq_c = gstats[Bt:]                                           # (Bt, D)
    var_c = esq_c - mean_c * mean_c
    inv_c = jax.lax.rsqrt(var_c + GN_EPS)

    # ---- fold GN affine into per-(Bt, D) scale/offset, apply + ReLU ----
    scale_c = inv_c * gn_g                                        # (Bt, D)
    off_c = gn_b - mean_c * scale_c                               # (Bt, D)
    gn = jnp.maximum(h3 * scale_c[:, None, :] + off_c[:, None, :], 0.0)

    # ---- residual + single-pass LayerNorm over D ----
    res = xm + gn                                                 # (Bt, T, D)
    inv_d = 1.0 / D
    s1 = jnp.sum(res, axis=2, keepdims=True) * inv_d              # (Bt, T, 1) = mu
    s2 = jnp.sum(res * res, axis=2, keepdims=True) * inv_d        # (Bt, T, 1) = E[x^2]
    var = s2 - s1 * s1
    inv = jax.lax.rsqrt(var + LN_EPS)
    out = (res - s1) * inv * ln_g + ln_b
    o_ref[...] = out.astype(o_ref.dtype)


def _choose_batch_block(B, T, D, vmem_budget_bytes=48 << 20, live_factor=12):
    """Samples per grid step.

    Budgets the *accounted* VMEM footprint (double-buffered in/out plus ~8-10 live
    (Bt*T, D) f32 temporaries ~= live_factor x the raw f32 x block), targets >=512
    MXU rows per step, and prefers an even grid-step count (v7x: 2 TensorCores).
    The 48 MiB cap keeps the block safe on v7x's 64 MiB VMEM.
    """
    per_sample_bytes = T * D * 4 * live_factor
    max_bt = max(1, vmem_budget_bytes // per_sample_bytes)
    target_rows = 512
    best = 1
    for bt in range(1, B + 1):
        if B % bt != 0:
            continue
        if bt > max_bt:
            break
        best = bt
        if bt * T >= target_rows:
            break
    # Prefer an even number of grid steps for v7x's 2 TCs, but only if the smaller
    # block still keeps the MXU reasonably fed.
    steps = B // best
    if steps > 1 and steps % 2 == 1:
        for bt in range(best - 1, 0, -1):
            if B % bt == 0 and (B // bt) % 2 == 0 and bt * T >= min(256, best * T):
                best = bt
                break
    return best


def local_module_forward(x, x_mask, y, y_mask, params, num_groups=16, batch_block=None):
    B, T, D = x.shape
    G = num_groups
    assert D % G == 0, "model_dim must be divisible by num_groups"
    gs = D // G

    w1t, b1, dw, db, gn_g, gn_b, ln_g, ln_b = params

    # masks as float multipliers (general boolean masks supported)
    mx = x_mask.astype(x.dtype)[..., None]            # (B, T, 1)
    my = y_mask.astype(y.dtype)[..., None]            # (B, Ty, 1)

    # ---- pack per-channel params into a single (16, D) array ----
    pvec = jnp.zeros((16, D), jnp.float32)
    pvec = pvec.at[0:3].set(dw.astype(jnp.float32))
    pvec = pvec.at[3].set(jnp.reshape(b1, (D,)).astype(jnp.float32))
    pvec = pvec.at[4].set(jnp.reshape(db, (D,)).astype(jnp.float32))
    pvec = pvec.at[5].set(jnp.reshape(gn_g, (D,)).astype(jnp.float32))
    pvec = pvec.at[6].set(jnp.reshape(gn_b, (D,)).astype(jnp.float32))
    pvec = pvec.at[7].set(jnp.reshape(ln_g, (D,)).astype(jnp.float32))
    pvec = pvec.at[8].set(jnp.reshape(ln_b, (D,)).astype(jnp.float32))

    # ---- group summation / expansion matrices ----
    grp = jnp.arange(D) // gs
    sg = (grp[:, None] == jnp.arange(G)[None, :]).astype(jnp.float32) / float(T * gs)  # (D, G)
    sgt = (jnp.arange(G)[:, None] == grp[None, :]).astype(jnp.float32)                  # (G, D)

    # bf16 weights for the MXU (halves weight HBM traffic / VMEM), f32 accumulate.
    w1t_bf = w1t.astype(jnp.bfloat16)

    Bt = batch_block if batch_block is not None else _choose_batch_block(B, T, D)
    assert B % Bt == 0
    grid = (B // Bt,)

    # Explicit scoped-VMEM limit sized from the real footprint (capped for v7x).
    block_bytes = Bt * T * D * 4
    est_vmem = (
        4 * block_bytes                        # double-buffered x in + out
        + 10 * block_bytes                     # live (Bt*T, D) f32 temporaries
        + 2 * Bt * T * 128 * 4                 # double-buffered mask tile (lane-padded)
        + D * D * 2                            # bf16 pointwise weights
        + (16 + 2 * G) * D * 4                 # packed params + group matrices
    )
    vmem_limit = int(min(48 << 20, max(16 << 20, est_vmem * 5 // 4)))

    full = lambda shape: pl.BlockSpec(shape, lambda b: tuple(0 for _ in shape))

    out_x = pl.pallas_call(
        _local_module_kernel,
        out_shape=jax.ShapeDtypeStruct((B, T, D), x.dtype),
        grid=grid,
        in_specs=[
            pl.BlockSpec((Bt, T, D), lambda b: (b, 0, 0)),   # x
            pl.BlockSpec((Bt, T, 1), lambda b: (b, 0, 0)),   # mask
            full((D, D)),                                    # W1^T (in, out), bf16
            full((16, D)),                                   # packed per-channel params
            full((D, G)),                                    # group summation (scaled)
            full((G, D)),                                    # group expansion
        ],
        out_specs=pl.BlockSpec((Bt, T, D), lambda b: (b, 0, 0)),
        compiler_params=pltpu.CompilerParams(
            dimension_semantics=("parallel",),
            vmem_limit_bytes=vmem_limit,
        ),
    )(x, mx, w1t_bf, pvec, sg, sgt)

    # y masking is a pure elementwise multiply -> plain JAX/XLA hits the HBM roofline.
    out_y = y * my

    return out_x, out_y


def _reference_forward(x, x_mask, y, y_mask, params, num_groups=16):
    # plain-JAX reference mirroring the PyTorch semantics, for sanity checking
    w1t, b1, dw, db, gn_g, gn_b, ln_g, ln_b = params
    B, T, D = x.shape
    gs = D // num_groups
    xm = x * x_mask.astype(x.dtype)[..., None]
    ym = y * y_mask.astype(y.dtype)[..., None]
    h = jnp.einsum('btd,de->bte', xm, w1t) + b1
    hp = jnp.pad(h, ((0, 0), (1, 1), (0, 0)))
    h2 = hp[:, :-2] * dw[0] + hp[:, 1:-1] * dw[1] + hp[:, 2:] * dw[2] + db
    h2g = h2.reshape(B, T, num_groups, gs)
    mean = h2g.mean(axis=(1, 3), keepdims=True)
    var = ((h2g - mean) ** 2).mean(axis=(1, 3), keepdims=True)
    gn = ((h2g - mean) / jnp.sqrt(var + GN_EPS)).reshape(B, T, D) * gn_g + gn_b
    gn = jnp.maximum(gn, 0.0)
    res = xm + gn
    mu = res.mean(-1, keepdims=True)
    v = ((res - mu) ** 2).mean(-1, keepdims=True)
    out = (res - mu) / jnp.sqrt(v + LN_EPS) * ln_g + ln_b
    return out, ym


if __name__ == "__main__":
    # Small but lane-dense shapes: D multiple of 128, B gives a multi-sample block.
    B, T, D, G = 4, 16, 128, 16
    Ty = 16

    key = jax.random.PRNGKey(0)
    ks = jax.random.split(key, 8)
    x = jax.random.normal(ks[0], (B, T, D), jnp.float32)
    y = jax.random.normal(ks[1], (B, Ty, D), jnp.float32)
    lens_x = jnp.array([T, T - 3, T - 7, 2])
    lens_y = jnp.array([Ty - 2, Ty, 5, Ty - 1])
    x_mask = jnp.arange(T)[None, :] < lens_x[:, None]      # (B, T) bool
    y_mask = jnp.arange(Ty)[None, :] < lens_y[:, None]     # (B, Ty) bool

    # Deterministic synthetic parameters (shapes from the module __init__).
    w1t = 0.15 * jax.random.normal(ks[2], (D, D), jnp.float32)    # Conv1d(k=1) weight^T
    b1 = 0.05 * jax.random.normal(ks[3], (1, D), jnp.float32)     # Conv1d(k=1) bias
    dw = 0.40 * jax.random.normal(ks[4], (3, D), jnp.float32)     # depthwise taps [k, D]
    db = 0.05 * jax.random.normal(ks[5], (1, D), jnp.float32)     # depthwise bias
    gn_g = jnp.ones((1, D), jnp.float32)                          # GroupNorm gamma
    gn_b = jnp.zeros((1, D), jnp.float32)                         # GroupNorm beta
    ln_g = jnp.ones((1, D), jnp.float32)                          # LayerNorm gamma
    ln_b = jnp.zeros((1, D), jnp.float32)                         # LayerNorm beta
    params = (w1t, b1, dw, db, gn_g, gn_b, ln_g, ln_b)

    out_x, out_y = local_module_forward(x, x_mask, y, y_mask, params, num_groups=G)
    jax.block_until_ready((out_x, out_y))

    ref_x, ref_y = _reference_forward(x, x_mask, y, y_mask, params, num_groups=G)
    assert jnp.allclose(out_x, ref_x, rtol=2e-2, atol=2e-2), "x mismatch"
    assert jnp.allclose(out_y, ref_y, rtol=2e-2, atol=2e-2), "y mismatch"

    print("KERNEL_OK")
</pallas_src>

<mosaic_0001>
module attributes {stable_mosaic.version = 11 : i64} {
  func.func @_local_module_kernel(%arg0: i32, %arg1: memref<4x16x128xf32, #tpu.memory_space<vmem>>, %arg2: memref<4x16x1xf32, #tpu.memory_space<vmem>>, %arg3: memref<128x128xbf16, #tpu.memory_space<vmem>>, %arg4: memref<16x128xf32, #tpu.memory_space<vmem>>, %arg5: memref<128x16xf32, #tpu.memory_space<vmem>>, %arg6: memref<16x128xf32, #tpu.memory_space<vmem>>, %arg7: memref<4x16x128xf32, #tpu.memory_space<vmem>>) attributes {dimension_semantics = [#tpu.dimension_semantics<parallel>], iteration_bounds = array<i64: 1>, scalar_prefetch = 0 : i64, scratch_operands = 0 : i64, tpu.core_type = #tpu.core_type<tc>, window_params = [{transform_indices = @transform_0, window_bounds = array<i64: 4, 16, 128>}, {transform_indices = @transform_1, window_bounds = array<i64: 4, 16, 1>}, {pipeline_mode = #tpu.pipeline_mode<synchronous>, transform_indices = @transform_2, window_bounds = array<i64: 128, 128>}, {pipeline_mode = #tpu.pipeline_mode<synchronous>, transform_indices = @transform_3, window_bounds = array<i64: 16, 128>}, {pipeline_mode = #tpu.pipeline_mode<synchronous>, transform_indices = @transform_4, window_bounds = array<i64: 128, 16>}, {pipeline_mode = #tpu.pipeline_mode<synchronous>, transform_indices = @transform_5, window_bounds = array<i64: 16, 128>}, {transform_indices = @transform_6, window_bounds = array<i64: 4, 16, 128>}]} {
    %c0 = arith.constant 0 : index
    %c0_0 = arith.constant 0 : index
    %0 = vector.load %arg4[%c0, %c0_0] : memref<16x128xf32, #tpu.memory_space<vmem>>, vector<1x128xf32>
    %c1 = arith.constant 1 : index
    %c0_1 = arith.constant 0 : index
    %1 = vector.load %arg4[%c1, %c0_1] : memref<16x128xf32, #tpu.memory_space<vmem>>, vector<1x128xf32>
    %c2 = arith.constant 2 : index
    %c0_2 = arith.constant 0 : index
    %2 = vector.load %arg4[%c2, %c0_2] : memref<16x128xf32, #tpu.memory_space<vmem>>, vector<1x128xf32>
    %c3 = arith.constant 3 : index
    %c0_3 = arith.constant 0 : index
    %3 = vector.load %arg4[%c3, %c0_3] : memref<16x128xf32, #tpu.memory_space<vmem>>, vector<1x128xf32>
    %c4 = arith.constant 4 : index
    %c0_4 = arith.constant 0 : index
    %4 = vector.load %arg4[%c4, %c0_4] : memref<16x128xf32, #tpu.memory_space<vmem>>, vector<1x128xf32>
    %c5 = arith.constant 5 : index
    %c0_5 = arith.constant 0 : index
    %5 = vector.load %arg4[%c5, %c0_5] : memref<16x128xf32, #tpu.memory_space<vmem>>, vector<1x128xf32>
    %c6 = arith.constant 6 : index
    %c0_6 = arith.constant 0 : index
    %6 = vector.load %arg4[%c6, %c0_6] : memref<16x128xf32, #tpu.memory_space<vmem>>, vector<1x128xf32>
    %c7 = arith.constant 7 : index
    %c0_7 = arith.constant 0 : index
    %7 = vector.load %arg4[%c7, %c0_7] : memref<16x128xf32, #tpu.memory_space<vmem>>, vector<1x128xf32>
    %c8 = arith.constant 8 : index
    %c0_8 = arith.constant 0 : index
    %8 = vector.load %arg4[%c8, %c0_8] : memref<16x128xf32, #tpu.memory_space<vmem>>, vector<1x128xf32>
    %c0_9 = arith.constant 0 : index
    %c0_10 = arith.constant 0 : index
    %c0_11 = arith.constant 0 : index
    %9 = vector.load %arg1[%c0_9, %c0_10, %c0_11] : memref<4x16x128xf32, #tpu.memory_space<vmem>>, vector<4x16x128xf32>
    %c0_12 = arith.constant 0 : index
    %c0_13 = arith.constant 0 : index
    %c0_14 = arith.constant 0 : index
    %10 = vector.load %arg2[%c0_12, %c0_13, %c0_14] : memref<4x16x1xf32, #tpu.memory_space<vmem>>, vector<4x16x1xf32>
    %11 = vector.broadcast %10 : vector<4x16x1xf32> to vector<4x16x128xf32>
    %12 = arith.mulf %9, %11 : vector<4x16x128xf32>
    %13 = vector.shape_cast %12 : vector<4x16x128xf32> to vector<64x128xf32>
    %14 = arith.truncf %13 : vector<64x128xf32> to vector<64x128xbf16>
    %c0_15 = arith.constant 0 : index
    %c0_16 = arith.constant 0 : index
    %15 = vector.load %arg3[%c0_15, %c0_16] : memref<128x128xbf16, #tpu.memory_space<vmem>>, vector<128x128xbf16>
    %cst = arith.constant dense<0.000000e+00> : vector<64x128xf32>
    %16 = tpu.matmul %14, %15, %cst {dimension_numbers = #tpu.dot_dimension_numbers<[1], [0], [0], [1], [0, 0, 1, 1], [], []>} : vector<64x128xbf16>, vector<128x128xbf16>, vector<64x128xf32> -> vector<64x128xf32>
    %17 = vector.broadcast %3 : vector<1x128xf32> to vector<64x128xf32>
    %18 = arith.addf %16, %17 : vector<64x128xf32>
    %19 = tpu.iota {dimensions = array<i32: 0>} : vector<64x1xi32>
    %c16_i32 = arith.constant 16 : i32
    %c0_i32 = arith.constant 0 : i32
    %20 = arith.cmpi eq, %c16_i32, %c0_i32 : i32
    %c1_i32 = arith.constant 1 : i32
    %21 = arith.select %20, %c1_i32, %c16_i32 : i32
    %22 = vector.broadcast %21 : i32 to vector<64x1xi32>
    %23 = arith.remsi %19, %22 : vector<64x1xi32>
    %c0_i32_17 = arith.constant 0 : i32
    %24 = vector.broadcast %c0_i32_17 : i32 to vector<64x1xi32>
    %25 = arith.cmpi ne, %23, %24 : vector<64x1xi32>
    %c0_i32_18 = arith.constant 0 : i32
    %26 = vector.broadcast %c0_i32_18 : i32 to vector<64x1xi32>
    %27 = arith.cmpi slt, %23, %26 : vector<64x1xi32>
    %c0_i32_19 = arith.constant 0 : i32
    %28 = arith.cmpi slt, %21, %c0_i32_19 : i32
    %29 = vector.broadcast %28 : i1 to vector<64x1xi1>
    %30 = vector.broadcast %29 : vector<64x1xi1> to vector<64x1xi1>
    %31 = arith.xori %27, %30 : vector<64x1xi1>
    %32 = arith.andi %31, %25 : vector<64x1xi1>
    %33 = vector.broadcast %21 : i32 to vector<64x1xi32>
    %34 = arith.addi %23, %33 : vector<64x1xi32>
    %35 = arith.select %32, %34, %23 : vector<64x1xi1>, vector<64x1xi32>
    %c0_i32_20 = arith.constant 0 : i32
    %36 = vector.broadcast %c0_i32_20 : i32 to vector<64x1xi32>
    %37 = arith.cmpi eq, %35, %36 : vector<64x1xi32>
    %c1_i32_21 = arith.constant 1 : i32
    %38 = tpu.dynamic_rotate %18 by %c1_i32_21 dim 0 : vector<64x128xf32>, i32 -> vector<64x128xf32>
    %cst_22 = arith.constant 0.000000e+00 : f32
    %39 = vector.shape_cast %37 : vector<64x1xi1> to vector<64x1xi1>
    %40 = vector.broadcast %39 : vector<64x1xi1> to vector<64x128xi1>
    %41 = vector.broadcast %cst_22 : f32 to vector<64x128xf32>
    %42 = arith.select %40, %41, %38 : vector<64x128xi1>, vector<64x128xf32>
    %c15_i32 = arith.constant 15 : i32
    %43 = vector.broadcast %c15_i32 : i32 to vector<64x1xi32>
    %44 = arith.cmpi eq, %35, %43 : vector<64x1xi32>
    %c63_i32 = arith.constant 63 : i32
    %45 = tpu.dynamic_rotate %18 by %c63_i32 dim 0 : vector<64x128xf32>, i32 -> vector<64x128xf32>
    %cst_23 = arith.constant 0.000000e+00 : f32
    %46 = vector.shape_cast %44 : vector<64x1xi1> to vector<64x1xi1>
    %47 = vector.broadcast %46 : vector<64x1xi1> to vector<64x128xi1>
    %48 = vector.broadcast %cst_23 : f32 to vector<64x128xf32>
    %49 = arith.select %47, %48, %45 : vector<64x128xi1>, vector<64x128xf32>
    %50 = vector.broadcast %0 : vector<1x128xf32> to vector<64x128xf32>
    %51 = arith.mulf %42, %50 : vector<64x128xf32>
    %52 = vector.broadcast %1 : vector<1x128xf32> to vector<64x128xf32>
    %53 = arith.mulf %18, %52 : vector<64x128xf32>
    %54 = arith.addf %51, %53 : vector<64x128xf32>
    %55 = vector.broadcast %2 : vector<1x128xf32> to vector<64x128xf32>
    %56 = arith.mulf %49, %55 : vector<64x128xf32>
    %57 = arith.addf %54, %56 : vector<64x128xf32>
    %58 = vector.broadcast %4 : vector<1x128xf32> to vector<64x128xf32>
    %59 = arith.addf %57, %58 : vector<64x128xf32>
    %60 = vector.shape_cast %59 : vector<64x128xf32> to vector<4x16x128xf32>
    %cst_24 = arith.constant dense<0.000000e+00> : vector<4x128xf32>
    %61 = vector.multi_reduction <add>, %60, %cst_24 [1] : vector<4x16x128xf32> to vector<4x128xf32>
    %62 = arith.mulf %60, %60 : vector<4x16x128xf32>
    %cst_25 = arith.constant dense<0.000000e+00> : vector<4x128xf32>
    %63 = vector.multi_reduction <add>, %62, %cst_25 [1] : vector<4x16x128xf32> to vector<4x128xf32>
    %64 = tpu.concatenate %61, %63 in 0 : vector<4x128xf32>, vector<4x128xf32> -> vector<8x128xf32>
    %c0_26 = arith.constant 0 : index
    %c0_27 = arith.constant 0 : index
    %65 = vector.load %arg5[%c0_26, %c0_27] : memref<128x16xf32, #tpu.memory_space<vmem>>, vector<128x16xf32>
    %cst_28 = arith.constant dense<0.000000e+00> : vector<8x16xf32>
    %66 = tpu.matmul %64, %65, %cst_28 {dimension_numbers = #tpu.dot_dimension_numbers<[1], [0], [0], [1], [0, 0, 1, 1], [], []>} : vector<8x128xf32>, vector<128x16xf32>, vector<8x16xf32> -> vector<8x16xf32>
    %c0_29 = arith.constant 0 : index
    %c0_30 = arith.constant 0 : index
    %67 = vector.load %arg6[%c0_29, %c0_30] : memref<16x128xf32, #tpu.memory_space<vmem>>, vector<16x128xf32>
    %cst_31 = arith.constant dense<0.000000e+00> : vector<8x128xf32>
    %68 = tpu.matmul %66, %67, %cst_31 {dimension_numbers = #tpu.dot_dimension_numbers<[1], [0], [0], [1], [0, 0, 1, 1], [], []>} : vector<8x16xf32>, vector<16x128xf32>, vector<8x128xf32> -> vector<8x128xf32>
    %69 = vector.extract_strided_slice %68 {offsets = [0, 0], sizes = [4, 128], strides = [1, 1]} : vector<8x128xf32> to vector<4x128xf32>
    %70 = vector.extract_strided_slice %68 {offsets = [4, 0], sizes = [4, 128], strides = [1, 1]} : vector<8x128xf32> to vector<4x128xf32>
    %71 = arith.mulf %69, %69 : vector<4x128xf32>
    %72 = arith.subf %70, %71 : vector<4x128xf32>
    %cst_32 = arith.constant 9.99999974E-6 : f32
    %73 = vector.broadcast %cst_32 : f32 to vector<4x128xf32>
    %74 = arith.addf %72, %73 : vector<4x128xf32>
    %75 = math.rsqrt %74 : vector<4x128xf32>
    %76 = vector.broadcast %5 : vector<1x128xf32> to vector<4x128xf32>
    %77 = arith.mulf %75, %76 : vector<4x128xf32>
    %78 = arith.mulf %69, %77 : vector<4x128xf32>
    %79 = vector.broadcast %6 : vector<1x128xf32> to vector<4x128xf32>
    %80 = arith.subf %79, %78 : vector<4x128xf32>
    %81 = vector.shape_cast %77 : vector<4x128xf32> to vector<4x1x128xf32>
    %82 = vector.broadcast %81 : vector<4x1x128xf32> to vector<4x16x128xf32>
    %83 = arith.mulf %60, %82 : vector<4x16x128xf32>
    %84 = vector.shape_cast %80 : vector<4x128xf32> to vector<4x1x128xf32>
    %85 = vector.broadcast %84 : vector<4x1x128xf32> to vector<4x16x128xf32>
    %86 = arith.addf %83, %85 : vector<4x16x128xf32>
    %cst_33 = arith.constant 0.000000e+00 : f32
    %87 = vector.broadcast %cst_33 : f32 to vector<4x16x128xf32>
    %88 = arith.maximumf %86, %87 : vector<4x16x128xf32>
    %89 = arith.addf %12, %88 : vector<4x16x128xf32>
    %cst_34 = arith.constant dense<0.000000e+00> : vector<4x16xf32>
    %90 = vector.multi_reduction <add>, %89, %cst_34 [2] : vector<4x16x128xf32> to vector<4x16xf32>
    %91 = vector.shape_cast %90 : vector<4x16xf32> to vector<4x16x1xf32>
    %cst_35 = arith.constant 7.812500e-03 : f32
    %92 = vector.broadcast %cst_35 : f32 to vector<4x16x1xf32>
    %93 = arith.mulf %91, %92 : vector<4x16x1xf32>
    %94 = arith.mulf %89, %89 : vector<4x16x128xf32>
    %cst_36 = arith.constant dense<0.000000e+00> : vector<4x16xf32>
    %95 = vector.multi_reduction <add>, %94, %cst_36 [2] : vector<4x16x128xf32> to vector<4x16xf32>
    %96 = vector.shape_cast %95 : vector<4x16xf32> to vector<4x16x1xf32>
    %cst_37 = arith.constant 7.812500e-03 : f32
    %97 = vector.broadcast %cst_37 : f32 to vector<4x16x1xf32>
    %98 = arith.mulf %96, %97 : vector<4x16x1xf32>
    %99 = arith.mulf %93, %93 : vector<4x16x1xf32>
    %100 = arith.subf %98, %99 : vector<4x16x1xf32>
    %cst_38 = arith.constant 9.99999974E-6 : f32
    %101 = vector.broadcast %cst_38 : f32 to vector<4x16x1xf32>
    %102 = arith.addf %100, %101 : vector<4x16x1xf32>
    %103 = math.rsqrt %102 : vector<4x16x1xf32>
    %104 = vector.broadcast %93 : vector<4x16x1xf32> to vector<4x16x128xf32>
    %105 = arith.subf %89, %104 : vector<4x16x128xf32>
    %106 = vector.broadcast %103 : vector<4x16x1xf32> to vector<4x16x128xf32>
    %107 = arith.mulf %105, %106 : vector<4x16x128xf32>
    %108 = vector.shape_cast %7 : vector<1x128xf32> to vector<1x1x128xf32>
    %109 = vector.broadcast %108 : vector<1x1x128xf32> to vector<4x16x128xf32>
    %110 = arith.mulf %107, %109 : vector<4x16x128xf32>
    %111 = vector.shape_cast %8 : vector<1x128xf32> to vector<1x1x128xf32>
    %112 = vector.broadcast %111 : vector<1x1x128xf32> to vector<4x16x128xf32>
    %113 = arith.addf %110, %112 : vector<4x16x128xf32>
    %c0_39 = arith.constant 0 : index
    %c0_40 = arith.constant 0 : index
    %c0_41 = arith.constant 0 : index
    %114 = vector.load %arg7[%c0_39, %c0_40, %c0_41] : memref<4x16x128xf32, #tpu.memory_space<vmem>>, vector<4x16x128xf32>
    tpu.vector_store %arg7[%c0_39, %c0_40, %c0_41], %113 {strides = array<i32>} : memref<4x16x128xf32, #tpu.memory_space<vmem>>, vector<4x16x128xf32>,
    return
  }
  func.func @transform_0(%arg0: i32) -> (i32, i32, i32) {
    %c0_i32 = arith.constant 0 : i32
    %c0_i32_0 = arith.constant 0 : i32
    %c0_i32_1 = arith.constant 0 : i32
    return %arg0, %c0_i32, %c0_i32_0 : i32, i32, i32
  }
  func.func @transform_1(%arg0: i32) -> (i32, i32, i32) {
    %c0_i32 = arith.constant 0 : i32
    %c0_i32_0 = arith.constant 0 : i32
    %c0_i32_1 = arith.constant 0 : i32
    return %arg0, %c0_i32, %c0_i32_0 : i32, i32, i32
  }
  func.func @transform_2(%arg0: i32) -> (i32, i32) {
    %c0_i32 = arith.constant 0 : i32
    %c0_i32_0 = arith.constant 0 : i32
    %c0_i32_1 = arith.constant 0 : i32
    return %c0_i32, %c0_i32_0 : i32, i32
  }
  func.func @transform_3(%arg0: i32) -> (i32, i32) {
    %c0_i32 = arith.constant 0 : i32
    %c0_i32_0 = arith.constant 0 : i32
    %c0_i32_1 = arith.constant 0 : i32
    return %c0_i32, %c0_i32_0 : i32, i32
  }
  func.func @transform_4(%arg0: i32) -> (i32, i32) {
    %c0_i32 = arith.constant 0 : i32
    %c0_i32_0 = arith.constant 0 : i32
    %c0_i32_1 = arith.constant 0 : i32
    return %c0_i32, %c0_i32_0 : i32, i32
  }
  func.func @transform_5(%arg0: i32) -> (i32, i32) {
    %c0_i32 = arith.constant 0 : i32
    %c0_i32_0 = arith.constant 0 : i32
    %c0_i32_1 = arith.constant 0 : i32
    return %c0_i32, %c0_i32_0 : i32, i32
  }
  func.func @transform_6(%arg0: i32) -> (i32, i32, i32) {
    %c0_i32 = arith.constant 0 : i32
    %c0_i32_0 = arith.constant 0 : i32
    %c0_i32_1 = arith.constant 0 : i32
    return %arg0, %c0_i32, %c0_i32_0 : i32, i32, i32
  }
}

</mosaic_0001>

<llo_original>
// kernel: tpu_custom_call.1
$region0: #{tpu_custom_call.1}
  #allocation0 [shape = 'u32[]', space=smem, size = 0x4, offset = 0x4, fixed_abs, tag = 'smem constant byte address 0x4 - core index']
  #allocation1 [shape = 'u32[144,128]{1,0:T(1,128)}', space=vmem, size = 0x12000, scoped, tag = 'internal scratch']
  %s0 = inlined_call_operand.vmem [shape: f32[4,16,128], index: 0, kind: input, shape index: {}]
  %s1 = inlined_call_operand.vmem [shape: f32[4,16,1], index: 1, kind: input, shape index: {}]
  %s2 = inlined_call_operand.vmem [shape: bf16[128,128], index: 2, kind: input, shape index: {}]
  %s3 = inlined_call_operand.vmem [shape: f32[16,128], index: 3, kind: input, shape index: {}]
  %s4 = inlined_call_operand.vmem [shape: f32[128,16], index: 4, kind: input, shape index: {}]
  %s5 = inlined_call_operand.vmem [shape: f32[16,128], index: 5, kind: input, shape index: {}]
  %s6 = inlined_call_operand.hbm [shape: f32[4,16,128], index: 6, kind: output, shape index: {}]
  %s7 = sld [smem:[#allocation0]]
  $region34: #{tpu_custom_call.1} parent=0
    _
  %s9 = ssub.s32 1, %s7
  %s10 = scalar_select 0, %s9, %s7
  $region1: #{tpu_custom_call.1} parent=0
    #allocation2 [shape = 'u8[32768]{0}', space=vmem, size = 0x8000, scoped, tag = 'output window, operand 0, single buffered']
    #allocation3 [shape = 's32[1]{0}', space=sflag, size = 0x4, scoped, tag = 'scoped memory for tpu_custom_call.1']
    %11 = vsyncpa [#allocation3], 0
    // Predicated region
    $region2: #{tpu_custom_call.1} parent=1 // pred_check
      _
    $region3: #{tpu_custom_call.1} parent=1 // pred_check_branch
      %13 = sbr.rel (0) target = $region5
    $region4: #{tpu_custom_call.1} parent=1 // pred_region
      _
    $region5: #{tpu_custom_call.1} parent=1 // pred_fallthru
      _
    // Predicated region
    $region6: #{tpu_custom_call.1} parent=1 // pred_check
      _
    $region7: #{tpu_custom_call.1} parent=1 // pred_check_branch
      %15 = sbr.rel (0) target = $region9
    $region8: #{tpu_custom_call.1} parent=1 // pred_region
      _
    $region9: #{tpu_custom_call.1} parent=1 // pred_fallthru
      _
    // Predicated region
    $region10: #{tpu_custom_call.1} parent=1 // pred_check
      _
    $region11: #{tpu_custom_call.1} parent=1 // pred_check_branch
      %17 = sbr.rel (0) target = $region13
    $region12: #{tpu_custom_call.1} parent=1 // pred_region
      _
    $region13: #{tpu_custom_call.1} parent=1 // pred_fallthru
      _
    // Predicated region
    $region14: #{tpu_custom_call.1} parent=1 // pred_check
      _
    $region15: #{tpu_custom_call.1} parent=1 // pred_check_branch
      %19 = sbr.rel (0) target = $region17
    $region16: #{tpu_custom_call.1} parent=1 // pred_region
      _
    $region17: #{tpu_custom_call.1} parent=1 // pred_fallthru
      _
    // Predicated region
    $region18: #{tpu_custom_call.1} parent=1 // pred_check
      _
    $region19: #{tpu_custom_call.1} parent=1 // pred_check_branch
      %21 = sbr.rel (0) target = $region21
    $region20: #{tpu_custom_call.1} parent=1 // pred_region
      _
    $region21: #{tpu_custom_call.1} parent=1 // pred_fallthru
      _
    // Predicated region
    $region22: #{tpu_custom_call.1} parent=1 // pred_check
      _
    $region23: #{tpu_custom_call.1} parent=1 // pred_check_branch
      %23 = sbr.rel (0) target = $region25
    $region24: #{tpu_custom_call.1} parent=1 // pred_region
      _
    $region25: #{tpu_custom_call.1} parent=1 // pred_fallthru
      _
    %v25 = vld [vmem:[%s3] sm:$0x1]
    %v26 = vld [vmem:[%s3 + $0x1] sm:$0x1]
    %v27 = vld [vmem:[%s3 + $0x2] sm:$0x1]
    %v28 = vld [vmem:[%s3 + $0x3] sm:$0x1]
    %v29 = vld [vmem:[%s3 + $0x4] sm:$0x1]
    %v30 = vld [vmem:[%s3 + $0x5] sm:$0x1]
    %v31 = vld [vmem:[%s3 + $0x6] sm:$0x1]
    %v32 = vld [vmem:[%s3 + $0x7] sm:$0x1]
    %v33 = vld [vmem:[%s3 + $0x8] sm:$0x1]
    %v34 = vld [vmem:[%s0] sm:$0xff]
    %v35 = vld [vmem:[%s0 + $0x8] sm:$0xff]
    %v36 = vld [vmem:[%s0 + $0x10] sm:$0xff]
    %v37 = vld [vmem:[%s0 + $0x18] sm:$0xff]
    %v38 = vld [vmem:[%s0 + $0x20] sm:$0xff]
    %v39 = vld [vmem:[%s0 + $0x28] sm:$0xff]
    %v40 = vld [vmem:[%s0 + $0x30] sm:$0xff]
    %v41 = vld [vmem:[%s0 + $0x38] sm:$0xff]
    %v42 = vld [vmem:[%s1] sm:$0xff]
    %v43 = vld [vmem:[%s1 + $0x8] sm:$0xff]
    %v44 = vld [vmem:[%s1 + $0x10] sm:$0xff]
    %v45 = vld [vmem:[%s1 + $0x18] sm:$0xff]
    %v46 = vld [vmem:[%s1 + $0x20] sm:$0xff]
    %v47 = vld [vmem:[%s1 + $0x28] sm:$0xff]
    %v48 = vld [vmem:[%s1 + $0x30] sm:$0xff]
    %v49 = vld [vmem:[%s1 + $0x38] sm:$0xff]
    %51 = vset.pattern.permute.xlu0 0
    %52 = vperm.xlu0 %51, %v42
    %v53 = vpop.permute.xlu0 %52
    %56 = vset.pattern.permute.xlu0 0
    %57 = vperm.xlu0 %56, %v43
    %v58 = vpop.permute.xlu0 %57
    %61 = vset.pattern.permute.xlu0 0
    %62 = vperm.xlu0 %61, %v44
    %v63 = vpop.permute.xlu0 %62
    %66 = vset.pattern.permute.xlu0 0
    %67 = vperm.xlu0 %66, %v45
    %v68 = vpop.permute.xlu0 %67
    %71 = vset.pattern.permute.xlu0 0
    %72 = vperm.xlu0 %71, %v46
    %v73 = vpop.permute.xlu0 %72
    %76 = vset.pattern.permute.xlu0 0
    %77 = vperm.xlu0 %76, %v47
    %v78 = vpop.permute.xlu0 %77
    %81 = vset.pattern.permute.xlu0 0
    %82 = vperm.xlu0 %81, %v48
    %v83 = vpop.permute.xlu0 %82
    %86 = vset.pattern.permute.xlu0 0
    %87 = vperm.xlu0 %86, %v49
    %v88 = vpop.permute.xlu0 %87
    %v90 = vmul.f32 %v34, %v53
    %v91 = vmul.f32 %v35, %v58
    %v92 = vmul.f32 %v36, %v63
    %v93 = vmul.f32 %v37, %v68
    %v94 = vmul.f32 %v38, %v73
    %v95 = vmul.f32 %v39, %v78
    %v96 = vmul.f32 %v40, %v83
    %v97 = vmul.f32 %v41, %v88
    %v98 = vpack.c.bf16 %v91, %v90
    %v99 = vpack.c.bf16 %v93, %v92
    %v100 = vpack.c.bf16 %v95, %v94
    %v101 = vpack.c.bf16 %v97, %v96
    %v102 = vld [vmem:[%s2] sm:$0xf]
    %v103 = vld [vmem:[%s2 + $0x4] sm:$0xf]
    %v104 = vld [vmem:[%s2 + $0x8] sm:$0xf]
    %v105 = vld [vmem:[%s2 + $0xc] sm:$0xf]
    %v106 = vld [vmem:[%s2 + $0x10] sm:$0xf]
    %v107 = vld [vmem:[%s2 + $0x14] sm:$0xf]
    %v108 = vld [vmem:[%s2 + $0x18] sm:$0xf]
    %v109 = vld [vmem:[%s2 + $0x1c] sm:$0xf]
    %v110 = vld [vmem:[%s2 + $0x20] sm:$0xf]
    %v111 = vld [vmem:[%s2 + $0x24] sm:$0xf]
    %v112 = vld [vmem:[%s2 + $0x28] sm:$0xf]
    %v113 = vld [vmem:[%s2 + $0x2c] sm:$0xf]
    %v114 = vld [vmem:[%s2 + $0x30] sm:$0xf]
    %v115 = vld [vmem:[%s2 + $0x34] sm:$0xf]
    %v116 = vld [vmem:[%s2 + $0x38] sm:$0xf]
    %v117 = vld [vmem:[%s2 + $0x3c] sm:$0xf]
    %v118 = vlaneseq
    %v119 = vshrl.u32 %v118, 7
    %v120 = vsub.s32 0, %v119
    %v121 = vrot.slane %v28, %v120
    %v138 = vunpack.c.l.b16 %v102
    %v139 = vunpack.c.l.b16 %v103
    %v140 = vunpack.c.l.b16 %v104
    %v141 = vunpack.c.l.b16 %v105
    %v142 = vunpack.c.l.b16 %v106
    %v143 = vunpack.c.l.b16 %v107
    %v144 = vunpack.c.l.b16 %v108
    %v145 = vunpack.c.l.b16 %v109
    %v146 = vunpack.c.l.b16 %v110
    %v147 = vunpack.c.l.b16 %v111
    %v148 = vunpack.c.l.b16 %v112
    %v149 = vunpack.c.l.b16 %v113
    %v150 = vunpack.c.l.b16 %v114
    %v151 = vunpack.c.l.b16 %v115
    %v152 = vunpack.c.l.b16 %v116
    %v153 = vunpack.c.l.b16 %v117
    %v154 = vpack.c.b16 %v139, %v138
    %v155 = vpack.c.b16 %v141, %v140
    %v156 = vpack.c.b16 %v143, %v142
    %v157 = vpack.c.b16 %v145, %v144
    %v158 = vpack.c.b16 %v147, %v146
    %v159 = vpack.c.b16 %v149, %v148
    %v160 = vpack.c.b16 %v151, %v150
    %v161 = vpack.c.b16 %v153, %v152
    %170 = vmatprep.subr.bf16.mxu0 0
    %171 = vmatpush1.bf16.msra.mxu0 %v161
    %172 = vmatprep.subr.bf16.mxu0 0
    %173 = vmatpush1.bf16.msra.mxu0 %v160
    %174 = vmatprep.subr.bf16.mxu0 0
    %175 = vmatpush1.bf16.msra.mxu0 %v159
    %176 = vmatprep.subr.bf16.mxu0 0
    %177 = vmatpush1.bf16.msra.mxu0 %v158
    %178 = vmatprep.subr.bf16.mxu0 0
    %179 = vmatpush1.bf16.msra.mxu0 %v157
    %180 = vmatprep.subr.bf16.mxu0 0
    %181 = vmatpush1.bf16.msra.mxu0 %v156
    %182 = vmatprep.subr.bf16.mxu0 0
    %183 = vmatpush1.bf16.msra.mxu0 %v155
    %184 = vmatprep.subr.bf16.mxu0 0
    %185 = vmatpush1.bf16.msra.mxu0 %v154
    %186 = vmatprep.subr.bf16.mxu0 0
    %187 = vmatpush2.bf16.msra.mxu0 0
    %188 = vmatprep.subr.bf16.mxu0 0
    %189 = vmatpush2.bf16.msra.mxu0 0
    %190 = vmatprep.subr.bf16.mxu0 0
    %191 = vmatpush2.bf16.msra.mxu0 0
    %192 = vmatprep.subr.bf16.mxu0 0
    %193 = vmatpush2.bf16.msra.mxu0 0
    %194 = vmatprep.subr.bf16.mxu0 0
    %195 = vmatpush2.bf16.msra.mxu0 0
    %196 = vmatprep.subr.bf16.mxu0 0
    %197 = vmatpush2.bf16.msra.mxu0 0
    %198 = vmatprep.subr.bf16.mxu0 0
    %199 = vmatpush2.bf16.msra.mxu0 0
    %200 = vmatprep.subr.bf16.mxu0 0
    %201 = vmatpush2.bf16.msra.mxu0 0
    %202 = vmatprep.mubr.bf16.mxu0 0
    %203 = vmatmul.mubr.bf16.gmra.mxu0 %v98
    %v204 = vpop.f32.mrf.mxu0
    %v205 = vadd.f32 %v121, %v204
    %v206 = vpop.f32.mrf.mxu0
    %v207 = vpop.f32.mrf.mxu0
    %v208 = vadd.f32 %v121, %v207
    %v209 = vpop.f32.mrf.mxu0
    %210 = vmatprep.mubr.bf16.mxu0 0
    %211 = vmatmul.mubr.bf16.gmra.mxu0 %v99
    %v212 = vpop.f32.mrf.mxu0
    %v213 = vadd.f32 %v121, %v212
    %v214 = vpop.f32.mrf.mxu0
    %v215 = vpop.f32.mrf.mxu0
    %v216 = vadd.f32 %v121, %v215
    %v217 = vpop.f32.mrf.mxu0
    %218 = vmatprep.mubr.bf16.mxu0 0
    %219 = vmatmul.mubr.bf16.gmra.mxu0 %v100
    %v220 = vpop.f32.mrf.mxu0
    %v221 = vadd.f32 %v121, %v220
    %v222 = vpop.f32.mrf.mxu0
    %v223 = vpop.f32.mrf.mxu0
    %v224 = vadd.f32 %v121, %v223
    %v225 = vpop.f32.mrf.mxu0
    %226 = vmatprep.mubr.bf16.mxu0 0
    %227 = vmatmul.mubr.bf16.gmra.mxu0 %v101
    %v228 = vpop.f32.mrf.mxu0
    %v229 = vadd.f32 %v121, %v228
    %v230 = vpop.f32.mrf.mxu0
    %v231 = vpop.f32.mrf.mxu0
    %v232 = vadd.f32 %v121, %v231
    %v233 = vpop.f32.mrf.mxu0
    %234 = vdwg.mxu0
    %v235 = vlaneseq
    %v236 = vshrl.u32 %v235, 7
    %v237 = vadd.s32 %v236, 8
    %v238 = vadd.s32 %v236, 16
    %v239 = vadd.s32 %v236, 24
    %v240 = vadd.s32 %v236, 32
    %v241 = vadd.s32 %v236, 40
    %v242 = vadd.s32 %v236, 48
    %v243 = vadd.s32 %v236, 56
    %vm244 = vcmp.lt.s32.totalorder %v236, 0
    %v245 = vsub.s32 0, %v236
    %v246 = vsel %vm244, %v245, %v236
    %v247 = vshrl.u32 %v246, 4
    %v248 = vand.u32 %v246, 15
    %v249 = vsub.s32 0, %v248
    %v250 = vsel %vm244, %v249, %v248
    %vm251 = vcmp.lt.s32.totalorder %v237, 0
    %v252 = vsub.s32 0, %v237
    %v253 = vsel %vm251, %v252, %v237
    %v254 = vshrl.u32 %v253, 4
    %v255 = vand.u32 %v253, 15
    %v256 = vsub.s32 0, %v255
    %v257 = vsel %vm251, %v256, %v255
    %vm258 = vcmp.lt.s32.totalorder %v238, 0
    %v259 = vsub.s32 0, %v238
    %v260 = vsel %vm258, %v259, %v238
    %v261 = vshrl.u32 %v260, 4
    %v262 = vand.u32 %v260, 15
    %v263 = vsub.s32 0, %v262
    %v264 = vsel %vm258, %v263, %v262
    %vm265 = vcmp.lt.s32.totalorder %v239, 0
    %v266 = vsub.s32 0, %v239
    %v267 = vsel %vm265, %v266, %v239
    %v268 = vshrl.u32 %v267, 4
    %v269 = vand.u32 %v267, 15
    %v270 = vsub.s32 0, %v269
    %v271 = vsel %vm265, %v270, %v269
    %vm272 = vcmp.lt.s32.totalorder %v240, 0
    %v273 = vsub.s32 0, %v240
    %v274 = vsel %vm272, %v273, %v240
    %v275 = vshrl.u32 %v274, 4
    %v276 = vand.u32 %v274, 15
    %v277 = vsub.s32 0, %v276
    %v278 = vsel %vm272, %v277, %v276
    %vm279 = vcmp.lt.s32.totalorder %v241, 0
    %v280 = vsub.s32 0, %v241
    %v281 = vsel %vm279, %v280, %v241
    %v282 = vshrl.u32 %v281, 4
    %v283 = vand.u32 %v281, 15
    %v284 = vsub.s32 0, %v283
    %v285 = vsel %vm279, %v284, %v283
    %vm286 = vcmp.lt.s32.totalorder %v242, 0
    %v287 = vsub.s32 0, %v242
    %v288 = vsel %vm286, %v287, %v242
    %v289 = vshrl.u32 %v288, 4
    %v290 = vand.u32 %v288, 15
    %v291 = vsub.s32 0, %v290
    %v292 = vsel %vm286, %v291, %v290
    %vm293 = vcmp.lt.s32.totalorder %v243, 0
    %v294 = vsub.s32 0, %v243
    %v295 = vsel %vm293, %v294, %v243
    %v296 = vshrl.u32 %v295, 4
    %v297 = vand.u32 %v295, 15
    %v298 = vsub.s32 0, %v297
    %v299 = vsel %vm293, %v298, %v297
    %vm300 = vcmp.ne.s32.totalorder %v250, 0
    %vm301 = vcmp.ne.s32.totalorder %v257, 0
    %vm302 = vcmp.ne.s32.totalorder %v264, 0
    %vm303 = vcmp.ne.s32.totalorder %v271, 0
    %vm304 = vcmp.ne.s32.totalorder %v278, 0
    %vm305 = vcmp.ne.s32.totalorder %v285, 0
    %vm306 = vcmp.ne.s32.totalorder %v292, 0
    %vm307 = vcmp.ne.s32.totalorder %v299, 0
    %vm308 = vcmp.lt.s32.totalorder %v250, 0
    %vm309 = vcmp.lt.s32.totalorder %v257, 0
    %vm310 = vcmp.lt.s32.totalorder %v264, 0
    %vm311 = vcmp.lt.s32.totalorder %v271, 0
    %vm312 = vcmp.lt.s32.totalorder %v278, 0
    %vm313 = vcmp.lt.s32.totalorder %v285, 0
    %vm314 = vcmp.lt.s32.totalorder %v292, 0
    %vm315 = vcmp.lt.s32.totalorder %v299, 0
    %vm316 = vmand %vm308, %vm300
    %vm317 = vmand %vm309, %vm301
    %vm318 = vmand %vm310, %vm302
    %vm319 = vmand %vm311, %vm303
    %vm320 = vmand %vm312, %vm304
    %vm321 = vmand %vm313, %vm305
    %vm322 = vmand %vm314, %vm306
    %vm323 = vmand %vm315, %vm307
    %v324 = vadd.s32 %v250, 16
    %v325 = vadd.s32 %v257, 16
    %v326 = vadd.s32 %v264, 16
    %v327 = vadd.s32 %v271, 16
    %v328 = vadd.s32 %v278, 16
    %v329 = vadd.s32 %v285, 16
    %v330 = vadd.s32 %v292, 16
    %v331 = vadd.s32 %v299, 16
    %v332 = vsel %vm316, %v324, %v250
    %v333 = vsel %vm317, %v325, %v257
    %v334 = vsel %vm318, %v326, %v264
    %v335 = vsel %vm319, %v327, %v271
    %v336 = vsel %vm320, %v328, %v278
    %v337 = vsel %vm321, %v329, %v285
    %v338 = vsel %vm322, %v330, %v292
    %v339 = vsel %vm323, %v331, %v299
    %vm340 = vcmp.eq.s32.totalorder %v332, 0
    %vm341 = vcmp.eq.s32.totalorder %v333, 0
    %vm342 = vcmp.eq.s32.totalorder %v334, 0
    %vm343 = vcmp.eq.s32.totalorder %v335, 0
    %vm344 = vcmp.eq.s32.totalorder %v336, 0
    %vm345 = vcmp.eq.s32.totalorder %v337, 0
    %vm346 = vcmp.eq.s32.totalorder %v338, 0
    %vm347 = vcmp.eq.s32.totalorder %v339, 0
    %v348 = vrot.slane %v205, 7
    %v349 = vrot.slane %v208, 7
    %v350 = vrot.slane %v213, 7
    %v351 = vrot.slane %v216, 7
    %v352 = vrot.slane %v221, 7
    %v353 = vrot.slane %v224, 7
    %v354 = vrot.slane %v229, 7
    %v355 = vrot.slane %v232, 7
    %vm356 = vcmp.lt.s32.totalorder %v236, 1
    %v357 = vsel %vm356, %v354, %v355
    %v358 = vsel %vm356, %v353, %v354
    %v359 = vsel %vm356, %v352, %v353
    %v360 = vsel %vm356, %v351, %v352
    %v361 = vsel %vm356, %v350, %v351
    %v362 = vsel %vm356, %v349, %v350
    %v363 = vsel %vm356, %v348, %v349
    %v364 = vsel %vm356, %v355, %v348
    %v365 = vsel %vm340, 1, 0
    %v366 = vsel %vm341, 1, 0
    %v367 = vsel %vm342, 1, 0
    %v368 = vsel %vm343, 1, 0
    %v369 = vsel %vm344, 1, 0
    %v370 = vsel %vm345, 1, 0
    %v371 = vsel %vm346, 1, 0
    %v372 = vsel %vm347, 1, 0
    %vm373 = vcmp.eq.s32.totalorder %v365, 1
    %vm374 = vcmp.eq.s32.totalorder %v366, 1
    %vm375 = vcmp.eq.s32.totalorder %v367, 1
    %vm376 = vcmp.eq.s32.totalorder %v368, 1
    %vm377 = vcmp.eq.s32.totalorder %v369, 1
    %vm378 = vcmp.eq.s32.totalorder %v370, 1
    %vm379 = vcmp.eq.s32.totalorder %v371, 1
    %vm380 = vcmp.eq.s32.totalorder %v372, 1
    %v381 = vsel %vm373, 0.0, %v364
    %v382 = vsel %vm374, 0.0, %v363
    %v383 = vsel %vm375, 0.0, %v362
    %v384 = vsel %vm376, 0.0, %v361
    %v385 = vsel %vm377, 0.0, %v360
    %v386 = vsel %vm378, 0.0, %v359
    %v387 = vsel %vm379, 0.0, %v358
    %v388 = vsel %vm380, 0.0, %v357
    %vm389 = vcmp.eq.s32.totalorder %v332, 15
    %vm390 = vcmp.eq.s32.totalorder %v333, 15
    %vm391 = vcmp.eq.s32.totalorder %v334, 15
    %vm392 = vcmp.eq.s32.totalorder %v335, 15
    %vm393 = vcmp.eq.s32.totalorder %v336, 15
    %vm394 = vcmp.eq.s32.totalorder %v337, 15
    %vm395 = vcmp.eq.s32.totalorder %v338, 15
    %vm396 = vcmp.eq.s32.totalorder %v339, 15
    %v397 = vrot.slane %v205, 1
    %v398 = vrot.slane %v208, 1
    %v399 = vrot.slane %v213, 1
    %v400 = vrot.slane %v216, 1
    %v401 = vrot.slane %v221, 1
    %v402 = vrot.slane %v224, 1
    %v403 = vrot.slane %v229, 1
    %v404 = vrot.slane %v232, 1
    %vm405 = vcmp.lt.s32.totalorder %v236, 7
    %v406 = vsel %vm405, %v403, %v404
    %v407 = vsel %vm405, %v402, %v403
    %v408 = vsel %vm405, %v401, %v402
    %v409 = vsel %vm405, %v400, %v401
    %v410 = vsel %vm405, %v399, %v400
    %v411 = vsel %vm405, %v398, %v399
    %v412 = vsel %vm405, %v397, %v398
    %v413 = vsel %vm405, %v404, %v397
    %v414 = vsel %vm389, 1, 0
    %v415 = vsel %vm390, 1, 0
    %v416 = vsel %vm391, 1, 0
    %v417 = vsel %vm392, 1, 0
    %v418 = vsel %vm393, 1, 0
    %v419 = vsel %vm394, 1, 0
    %v420 = vsel %vm395, 1, 0
    %v421 = vsel %vm396, 1, 0
    %vm422 = vcmp.eq.s32.totalorder %v414, 1
    %vm423 = vcmp.eq.s32.totalorder %v415, 1
    %vm424 = vcmp.eq.s32.totalorder %v416, 1
    %vm425 = vcmp.eq.s32.totalorder %v417, 1
    %vm426 = vcmp.eq.s32.totalorder %v418, 1
    %vm427 = vcmp.eq.s32.totalorder %v419, 1
    %vm428 = vcmp.eq.s32.totalorder %v420, 1
    %vm429 = vcmp.eq.s32.totalorder %v421, 1
    %v430 = vsel %vm422, 0.0, %v412
    %v431 = vsel %vm423, 0.0, %v411
    %v432 = vsel %vm424, 0.0, %v410
    %v433 = vsel %vm425, 0.0, %v409
    %v434 = vsel %vm426, 0.0, %v408
    %v435 = vsel %vm427, 0.0, %v407
    %v436 = vsel %vm428, 0.0, %v406
    %v437 = vsel %vm429, 0.0, %v413
    %v438 = vlaneseq
    %v439 = vshrl.u32 %v438, 7
    %v440 = vsub.s32 0, %v439
    %v441 = vrot.slane %v25, %v440
    %v442 = vmul.f32 %v381, %v441
    %v443 = vmul.f32 %v382, %v441
    %v444 = vmul.f32 %v383, %v441
    %v445 = vmul.f32 %v384, %v441
    %v446 = vmul.f32 %v385, %v441
    %v447 = vmul.f32 %v386, %v441
    %v448 = vmul.f32 %v387, %v441
    %v449 = vmul.f32 %v388, %v441
    %v450 = vlaneseq
    %v451 = vshrl.u32 %v450, 7
    %v452 = vsub.s32 0, %v451
    %v453 = vrot.slane %v26, %v452
    %v454 = vmul.f32 %v205, %v453
    %v455 = vmul.f32 %v208, %v453
    %v456 = vmul.f32 %v213, %v453
    %v457 = vmul.f32 %v216, %v453
    %v458 = vmul.f32 %v221, %v453
    %v459 = vmul.f32 %v224, %v453
    %v460 = vmul.f32 %v229, %v453
    %v461 = vmul.f32 %v232, %v453
    %v462 = vadd.f32 %v442, %v454
    %v463 = vadd.f32 %v443, %v455
    %v464 = vadd.f32 %v444, %v456
    %v465 = vadd.f32 %v445, %v457
    %v466 = vadd.f32 %v446, %v458
    %v467 = vadd.f32 %v447, %v459
    %v468 = vadd.f32 %v448, %v460
    %v469 = vadd.f32 %v449, %v461
    %v470 = vlaneseq
    %v471 = vshrl.u32 %v470, 7
    %v472 = vsub.s32 0, %v471
    %v473 = vrot.slane %v27, %v472
    %v474 = vmul.f32 %v430, %v473
    %v475 = vmul.f32 %v431, %v473
    %v476 = vmul.f32 %v432, %v473
    %v477 = vmul.f32 %v433, %v473
    %v478 = vmul.f32 %v434, %v473
    %v479 = vmul.f32 %v435, %v473
    %v480 = vmul.f32 %v436, %v473
    %v481 = vmul.f32 %v437, %v473
    %v482 = vadd.f32 %v462, %v474
    %v483 = vadd.f32 %v463, %v475
    %v484 = vadd.f32 %v464, %v476
    %v485 = vadd.f32 %v465, %v477
    %v486 = vadd.f32 %v466, %v478
    %v487 = vadd.f32 %v467, %v479
    %v488 = vadd.f32 %v468, %v480
    %v489 = vadd.f32 %v469, %v481
    %v490 = vlaneseq
    %v491 = vshrl.u32 %v490, 7
    %v492 = vsub.s32 0, %v491
    %v493 = vrot.slane %v29, %v492
    %v494 = vadd.f32 %v482, %v493
    %v495 = vadd.f32 %v483, %v493
    %v496 = vadd.f32 %v484, %v493
    %v497 = vadd.f32 %v485, %v493
    %v498 = vadd.f32 %v486, %v493
    %v499 = vadd.f32 %v487, %v493
    %v500 = vadd.f32 %v488, %v493
    %v501 = vadd.f32 %v489, %v493
    %v502 = vadd.f32 %v494, %v495
    %v503 = vrot.slane %v502, 4
    %v504 = vadd.f32 %v502, %v503
    %v505 = vrot.slane %v504, 2
    %v506 = vadd.f32 %v504, %v505
    %v507 = vrot.slane %v506, 1
    %v508 = vadd.f32 %v506, %v507
    %v509 = vadd.f32 %v496, %v497
    %v510 = vrot.slane %v509, 4
    %v511 = vadd.f32 %v509, %v510
    %v512 = vrot.slane %v511, 2
    %v513 = vadd.f32 %v511, %v512
    %v514 = vrot.slane %v513, 1
    %v515 = vadd.f32 %v513, %v514
    %v516 = vadd.f32 %v498, %v499
    %v517 = vrot.slane %v516, 4
    %v518 = vadd.f32 %v516, %v517
    %v519 = vrot.slane %v518, 2
    %v520 = vadd.f32 %v518, %v519
    %v521 = vrot.slane %v520, 1
    %v522 = vadd.f32 %v520, %v521
    %v523 = vadd.f32 %v500, %v501
    %v524 = vrot.slane %v523, 4
    %v525 = vadd.f32 %v523, %v524
    %v526 = vrot.slane %v525, 2
    %v527 = vadd.f32 %v525, %v526
    %v528 = vrot.slane %v527, 1
    %v529 = vadd.f32 %v527, %v528
    %v530 = vmul.f32 %v494, %v494
    %v531 = vmul.f32 %v495, %v495
    %v532 = vmul.f32 %v496, %v496
    %v533 = vmul.f32 %v497, %v497
    %v534 = vmul.f32 %v498, %v498
    %v535 = vmul.f32 %v499, %v499
    %v536 = vmul.f32 %v500, %v500
    %v537 = vmul.f32 %v501, %v501
    %v538 = vadd.f32 %v530, %v531
    %v539 = vrot.slane %v538, 4
    %v540 = vadd.f32 %v538, %v539
    %v541 = vrot.slane %v540, 2
    %v542 = vadd.f32 %v540, %v541
    %v543 = vrot.slane %v542, 1
    %v544 = vadd.f32 %v542, %v543
    %v545 = vadd.f32 %v532, %v533
    %v546 = vrot.slane %v545, 4
    %v547 = vadd.f32 %v545, %v546
    %v548 = vrot.slane %v547, 2
    %v549 = vadd.f32 %v547, %v548
    %v550 = vrot.slane %v549, 1
    %v551 = vadd.f32 %v549, %v550
    %v552 = vadd.f32 %v534, %v535
    %v553 = vrot.slane %v552, 4
    %v554 = vadd.f32 %v552, %v553
    %v555 = vrot.slane %v554, 2
    %v556 = vadd.f32 %v554, %v555
    %v557 = vrot.slane %v556, 1
    %v558 = vadd.f32 %v556, %v557
    %v559 = vadd.f32 %v536, %v537
    %v560 = vrot.slane %v559, 4
    %v561 = vadd.f32 %v559, %v560
    %v562 = vrot.slane %v561, 2
    %v563 = vadd.f32 %v561, %v562
    %v564 = vrot.slane %v563, 1
    %v565 = vadd.f32 %v563, %v564
    %vm570 = vcmask 1041409
    %v571 = vsel %vm570, %v515, %v508
    %vm572 = vcmask 1042434
    %v573 = vsel %vm572, %v522, %v571
    %vm574 = vcmask 1043459
    %v575 = vsel %vm574, %v529, %v573
    %vm581 = vcmask 1045509
    %v582 = vsel %vm581, %v551, %v544
    %vm583 = vcmask 1046534
    %v584 = vsel %vm583, %v558, %v582
    %vm585 = vcmask 1047559
    %v586 = vsel %vm585, %v565, %v584
    %vm588 = vcmask 1043456
    %v589 = vsel %vm588, %v575, %v586
    %v590 = vld [vmem:[%s4] sm:$0xff]
    %v591 = vld [vmem:[%s4 + $0x8] sm:$0xff]
    %v592 = vld [vmem:[%s4 + $0x10] sm:$0xff]
    %v593 = vld [vmem:[%s4 + $0x18] sm:$0xff]
    %v594 = vld [vmem:[%s4 + $0x20] sm:$0xff]
    %v595 = vld [vmem:[%s4 + $0x28] sm:$0xff]
    %v596 = vld [vmem:[%s4 + $0x30] sm:$0xff]
    %v597 = vld [vmem:[%s4 + $0x38] sm:$0xff]
    %v598 = vld [vmem:[%s4 + $0x40] sm:$0xff]
    %v599 = vld [vmem:[%s4 + $0x48] sm:$0xff]
    %v600 = vld [vmem:[%s4 + $0x50] sm:$0xff]
    %v601 = vld [vmem:[%s4 + $0x58] sm:$0xff]
    %v602 = vld [vmem:[%s4 + $0x60] sm:$0xff]
    %v603 = vld [vmem:[%s4 + $0x68] sm:$0xff]
    %v604 = vld [vmem:[%s4 + $0x70] sm:$0xff]
    %v605 = vld [vmem:[%s4 + $0x78] sm:$0xff]
    %606 = vmatprep.subr.mxu0 0.0
    %607 = vmatpush1.msra.mxu0 %v605
    %608 = vmatprep.subr.mxu0 0.0
    %609 = vmatpush1.msra.mxu0 %v604
    %610 = vmatprep.subr.mxu0 0.0
    %611 = vmatpush1.msra.mxu0 %v603
    %612 = vmatprep.subr.mxu0 0.0
    %613 = vmatpush1.msra.mxu0 %v602
    %614 = vmatprep.subr.mxu0 0.0
    %615 = vmatpush1.msra.mxu0 %v601
    %616 = vmatprep.subr.mxu0 0.0
    %617 = vmatpush1.msra.mxu0 %v600
    %618 = vmatprep.subr.mxu0 0.0
    %619 = vmatpush1.msra.mxu0 %v599
    %620 = vmatprep.subr.mxu0 0.0
    %621 = vmatpush1.msra.mxu0 %v598
    %622 = vmatprep.subr.mxu0 0.0
    %623 = vmatpush1.msra.mxu0 %v597
    %624 = vmatprep.subr.mxu0 0.0
    %625 = vmatpush1.msra.mxu0 %v596
    %626 = vmatprep.subr.mxu0 0.0
    %627 = vmatpush1.msra.mxu0 %v595
    %628 = vmatprep.subr.mxu0 0.0
    %629 = vmatpush1.msra.mxu0 %v594
    %630 = vmatprep.subr.mxu0 0.0
    %631 = vmatpush1.msra.mxu0 %v593
    %632 = vmatprep.subr.mxu0 0.0
    %633 = vmatpush1.msra.mxu0 %v592
    %634 = vmatprep.subr.mxu0 0.0
    %635 = vmatpush1.msra.mxu0 %v591
    %636 = vmatprep.subr.mxu0 0.0
    %637 = vmatpush1.msra.mxu0 %v590
    %638 = vmatprep.subr.mxu0 0.0
    %639 = vmatpush2.msra.mxu0 0.0
    %640 = vmatprep.subr.mxu0 0.0
    %641 = vmatpush2.msra.mxu0 0.0
    %642 = vmatprep.subr.mxu0 0.0
    %643 = vmatpush2.msra.mxu0 0.0
    %644 = vmatprep.subr.mxu0 0.0
    %645 = vmatpush2.msra.mxu0 0.0
    %646 = vmatprep.subr.mxu0 0.0
    %647 = vmatpush2.msra.mxu0 0.0
    %648 = vmatprep.subr.mxu0 0.0
    %649 = vmatpush2.msra.mxu0 0.0
    %650 = vmatprep.subr.mxu0 0.0
    %651 = vmatpush2.msra.mxu0 0.0
    %652 = vmatprep.subr.mxu0 0.0
    %653 = vmatpush2.msra.mxu0 0.0
    %654 = vmatprep.subr.mxu0 0.0
    %655 = vmatpush2.msra.mxu0 0.0
    %656 = vmatprep.subr.mxu0 0.0
    %657 = vmatpush2.msra.mxu0 0.0
    %658 = vmatprep.subr.mxu0 0.0
    %659 = vmatpush2.msra.mxu0 0.0
    %660 = vmatprep.subr.mxu0 0.0
    %661 = vmatpush2.msra.mxu0 0.0
    %662 = vmatprep.subr.mxu0 0.0
    %663 = vmatpush2.msra.mxu0 0.0
    %664 = vmatprep.subr.mxu0 0.0
    %665 = vmatpush2.msra.mxu0 0.0
    %666 = vmatprep.subr.mxu0 0.0
    %667 = vmatpush2.msra.mxu0 0.0
    %668 = vmatprep.subr.mxu0 0.0
    %669 = vmatpush2.msra.mxu0 0.0
    %670 = vmatprep.mubr.f32.mxu0 0.0
    %671 = vmatmul.mubr.f32.gmra.mxu0 %v589
    %v672 = vpop.f32.mrf.mxu0
    %v673 = vadd.f32 0.0, %v672
    %v674 = vpop.f32.mrf.mxu0
    %675 = vdwg.mxu0
    %v676 = vld [vmem:[%s5] sm:$0xff]
    %v677 = vld [vmem:[%s5 + $0x8] sm:$0xff]
    %vm678 = vcmask 130048
    %v680 = vsel %vm678, %v673, 0
    %682 = vmatprep.subr.mxu0 0.0
    %683 = vmatpush1.msra.mxu0 0.0
    %684 = vmatprep.subr.mxu0 0.0
    %685 = vmatpush1.msra.mxu0 0.0
    %686 = vmatprep.subr.mxu0 0.0
    %687 = vmatpush1.msra.mxu0 0.0
    %688 = vmatprep.subr.mxu0 0.0
    %689 = vmatpush1.msra.mxu0 0.0
    %690 = vmatprep.subr.mxu0 0.0
    %691 = vmatpush1.msra.mxu0 0.0
    %692 = vmatprep.subr.mxu0 0.0
    %693 = vmatpush1.msra.mxu0 0.0
    %694 = vmatprep.subr.mxu0 0.0
    %695 = vmatpush1.msra.mxu0 0.0
    %696 = vmatprep.subr.mxu0 0.0
    %697 = vmatpush1.msra.mxu0 0.0
    %698 = vmatprep.subr.mxu0 0.0
    %699 = vmatpush1.msra.mxu0 0.0
    %700 = vmatprep.subr.mxu0 0.0
    %701 = vmatpush1.msra.mxu0 0.0
    %702 = vmatprep.subr.mxu0 0.0
    %703 = vmatpush1.msra.mxu0 0.0
    %704 = vmatprep.subr.mxu0 0.0
    %705 = vmatpush1.msra.mxu0 0.0
    %706 = vmatprep.subr.mxu0 0.0
    %707 = vmatpush1.msra.mxu0 0.0
    %708 = vmatprep.subr.mxu0 0.0
    %709 = vmatpush1.msra.mxu0 0.0
    %710 = vmatprep.subr.mxu0 0.0
    %711 = vmatpush1.msra.mxu0 %v677
    %712 = vmatprep.subr.mxu0 0.0
    %713 = vmatpush1.msra.mxu0 %v676
    %714 = vmatprep.subr.mxu0 0.0
    %715 = vmatpush2.msra.mxu0 0.0
    %716 = vmatprep.subr.mxu0 0.0
    %717 = vmatpush2.msra.mxu0 0.0
    %718 = vmatprep.subr.mxu0 0.0
    %719 = vmatpush2.msra.mxu0 0.0
    %720 = vmatprep.subr.mxu0 0.0
    %721 = vmatpush2.msra.mxu0 0.0
    %722 = vmatprep.subr.mxu0 0.0
    %723 = vmatpush2.msra.mxu0 0.0
    %724 = vmatprep.subr.mxu0 0.0
    %725 = vmatpush2.msra.mxu0 0.0
    %726 = vmatprep.subr.mxu0 0.0
    %727 = vmatpush2.msra.mxu0 0.0
    %728 = vmatprep.subr.mxu0 0.0
    %729 = vmatpush2.msra.mxu0 0.0
    %730 = vmatprep.subr.mxu0 0.0
    %731 = vmatpush2.msra.mxu0 0.0
    %732 = vmatprep.subr.mxu0 0.0
    %733 = vmatpush2.msra.mxu0 0.0
    %734 = vmatprep.subr.mxu0 0.0
    %735 = vmatpush2.msra.mxu0 0.0
    %736 = vmatprep.subr.mxu0 0.0
    %737 = vmatpush2.msra.mxu0 0.0
    %738 = vmatprep.subr.mxu0 0.0
    %739 = vmatpush2.msra.mxu0 0.0
    %740 = vmatprep.subr.mxu0 0.0
    %741 = vmatpush2.msra.mxu0 0.0
    %742 = vmatprep.subr.mxu0 0.0
    %743 = vmatpush2.msra.mxu0 0.0
    %744 = vmatprep.subr.mxu0 0.0
    %745 = vmatpush2.msra.mxu0 0.0
    %746 = vmatprep.mubr.f32.mxu0 0.0
    %747 = vmatmul.mubr.f32.gmra.mxu0 %v680
    %v748 = vpop.f32.mrf.mxu0
    %v749 = vadd.f32 0.0, %v748
    %v750 = vpop.f32.mrf.mxu0
    %751 = vdwg.mxu0
    %v752 = vmul.f32 %v749, %v749
    %v754 = vrot.slane %v752, 4
    %v756 = vsub.f32 %v749, %v754
    %v757 = vadd.f32 %v756, 1e-05
    %v758 = vrsqrt.pop %v757
    %v759 = vlaneseq
    %v760 = vshrl.u32 %v759, 7
    %v761 = vsub.s32 0, %v760
    %v762 = vrot.slane %v30, %v761
    %v763 = vmul.f32 %v758, %v762
    %v765 = vrot.slane %v763, 4
    %v767 = vmul.f32 %v749, %v765
    %v768 = vlaneseq
    %v769 = vshrl.u32 %v768, 7
    %v770 = vsub.s32 0, %v769
    %v771 = vrot.slane %v31, %v770
    %v772 = vsub.f32 %v771, %v767
    %v773 = vcombine.high %v763, %v763
    %v775 = vunpack.c.l.s4 1966171168
    %v776 = vunpack.c.0.s8 %v775
    %v777 = vlaneseq
    %v778 = vshrl.u32 %v777, 7
    %v779 = vsub.s32 %v776, %v778
    %v780 = vrot.slane %v773, %v779
    %v781 = vcombine.high %v780, %v780
    %v783 = vunpack.c.l.s4 1966171168
    %v784 = vunpack.c.0.s8 %v783
    %v785 = vlaneseq
    %v786 = vshrl.u32 %v785, 7
    %v787 = vsub.s32 %v784, %v786
    %v788 = vrot.slane %v780, %v787
    %v790 = vunpack.c.l.s4 1966171168
    %v791 = vunpack.c.0.s8 %v790
    %v792 = vlaneseq
    %v793 = vshrl.u32 %v792, 7
    %v794 = vsub.s32 %v791, %v793
    %v795 = vrot.slane %v781, %v794
    %v796 = vcombine.high %v788, %v788
    %v797 = vcombine.high %v795, %v795
    %v798 = vlaneseq
    %v799 = vshrl.u32 %v798, 7
    %v800 = vsub.s32 0, %v799
    %v801 = vrot.slane %v788, %v800
    %v802 = vlaneseq
    %v803 = vshrl.u32 %v802, 7
    %v804 = vsub.s32 0, %v803
    %v805 = vrot.slane %v795, %v804
    %v806 = vlaneseq
    %v807 = vshrl.u32 %v806, 7
    %v808 = vsub.s32 0, %v807
    %v809 = vrot.slane %v796, %v808
    %v810 = vlaneseq
    %v811 = vshrl.u32 %v810, 7
    %v812 = vsub.s32 0, %v811
    %v813 = vrot.slane %v797, %v812
    %v818 = vmul.f32 %v494, %v801
    %v819 = vmul.f32 %v495, %v801
    %v820 = vmul.f32 %v496, %v805
    %v821 = vmul.f32 %v497, %v805
    %v822 = vmul.f32 %v498, %v809
    %v823 = vmul.f32 %v499, %v809
    %v824 = vmul.f32 %v500, %v813
    %v825 = vmul.f32 %v501, %v813
    %v828 = vunpack.c.l.s4 1966171168
    %v829 = vunpack.c.0.s8 %v828
    %v830 = vlaneseq
    %v831 = vshrl.u32 %v830, 7
    %v832 = vsub.s32 %v829, %v831
    %v833 = vrot.slane %v772, %v832
    %v834 = vcombine.high %v833, %v833
    %v836 = vunpack.c.l.s4 1966171168
    %v837 = vunpack.c.0.s8 %v836
    %v838 = vlaneseq
    %v839 = vshrl.u32 %v838, 7
    %v840 = vsub.s32 %v837, %v839
    %v841 = vrot.slane %v833, %v840
    %v843 = vunpack.c.l.s4 1966171168
    %v844 = vunpack.c.0.s8 %v843
    %v845 = vlaneseq
    %v846 = vshrl.u32 %v845, 7
    %v847 = vsub.s32 %v844, %v846
    %v848 = vrot.slane %v834, %v847
    %v849 = vcombine.high %v841, %v841
    %v850 = vcombine.high %v848, %v848
    %v851 = vlaneseq
    %v852 = vshrl.u32 %v851, 7
    %v853 = vsub.s32 0, %v852
    %v854 = vrot.slane %v841, %v853
    %v855 = vlaneseq
    %v856 = vshrl.u32 %v855, 7
    %v857 = vsub.s32 0, %v856
    %v858 = vrot.slane %v848, %v857
    %v859 = vlaneseq
    %v860 = vshrl.u32 %v859, 7
    %v861 = vsub.s32 0, %v860
    %v862 = vrot.slane %v849, %v861
    %v863 = vlaneseq
    %v864 = vshrl.u32 %v863, 7
    %v865 = vsub.s32 0, %v864
    %v866 = vrot.slane %v850, %v865
    %v871 = vadd.f32 %v818, %v854
    %v872 = vadd.f32 %v819, %v854
    %v873 = vadd.f32 %v820, %v858
    %v874 = vadd.f32 %v821, %v858
    %v875 = vadd.f32 %v822, %v862
    %v876 = vadd.f32 %v823, %v862
    %v877 = vadd.f32 %v824, %v866
    %v878 = vadd.f32 %v825, %v866
    %v879 = vmax.f32 %v871, 0.0
    %v880 = vmax.f32 %v872, 0.0
    %v881 = vmax.f32 %v873, 0.0
    %v882 = vmax.f32 %v874, 0.0
    %v883 = vmax.f32 %v875, 0.0
    %v884 = vmax.f32 %v876, 0.0
    %v885 = vmax.f32 %v877, 0.0
    %v886 = vmax.f32 %v878, 0.0
    %v887 = vadd.f32 %v90, %v879
    %v888 = vadd.f32 %v91, %v880
    %v889 = vadd.f32 %v92, %v881
    %v890 = vadd.f32 %v93, %v882
    %v891 = vadd.f32 %v94, %v883
    %v892 = vadd.f32 %v95, %v884
    %v893 = vadd.f32 %v96, %v885
    %v894 = vadd.f32 %v97, %v886
    %895 = vadd.xlane.f32.xlu0 %v887
    %v896 = vpop.xlane.xlu0 %895
    %897 = vadd.xlane.f32.xlu0 %v888
    %v898 = vpop.xlane.xlu0 %897
    %899 = vadd.xlane.f32.xlu0 %v889
    %v900 = vpop.xlane.xlu0 %899
    %901 = vadd.xlane.f32.xlu0 %v890
    %v902 = vpop.xlane.xlu0 %901
    %903 = vadd.xlane.f32.xlu0 %v891
    %v904 = vpop.xlane.xlu0 %903
    %905 = vadd.xlane.f32.xlu0 %v892
    %v906 = vpop.xlane.xlu0 %905
    %907 = vadd.xlane.f32.xlu0 %v893
    %v908 = vpop.xlane.xlu0 %907
    %909 = vadd.xlane.f32.xlu0 %v894
    %v910 = vpop.xlane.xlu0 %909
    %v911 = vmul.f32 %v896, 0.0078125
    %v912 = vmul.f32 %v898, 0.0078125
    %v913 = vmul.f32 %v900, 0.0078125
    %v914 = vmul.f32 %v902, 0.0078125
    %v915 = vmul.f32 %v904, 0.0078125
    %v916 = vmul.f32 %v906, 0.0078125
    %v917 = vmul.f32 %v908, 0.0078125
    %v918 = vmul.f32 %v910, 0.0078125
    %v919 = vmul.f32 %v887, %v887
    %v920 = vmul.f32 %v888, %v888
    %v921 = vmul.f32 %v889, %v889
    %v922 = vmul.f32 %v890, %v890
    %v923 = vmul.f32 %v891, %v891
    %v924 = vmul.f32 %v892, %v892
    %v925 = vmul.f32 %v893, %v893
    %v926 = vmul.f32 %v894, %v894
    %927 = vadd.xlane.f32.xlu0 %v919
    %v928 = vpop.xlane.xlu0 %927
    %929 = vadd.xlane.f32.xlu0 %v920
    %v930 = vpop.xlane.xlu0 %929
    %931 = vadd.xlane.f32.xlu0 %v921
    %v932 = vpop.xlane.xlu0 %931
    %933 = vadd.xlane.f32.xlu0 %v922
    %v934 = vpop.xlane.xlu0 %933
    %935 = vadd.xlane.f32.xlu0 %v923
    %v936 = vpop.xlane.xlu0 %935
    %937 = vadd.xlane.f32.xlu0 %v924
    %v938 = vpop.xlane.xlu0 %937
    %939 = vadd.xlane.f32.xlu0 %v925
    %v940 = vpop.xlane.xlu0 %939
    %941 = vadd.xlane.f32.xlu0 %v926
    %v942 = vpop.xlane.xlu0 %941
    %v943 = vmul.f32 %v928, 0.0078125
    %v944 = vmul.f32 %v930, 0.0078125
    %v945 = vmul.f32 %v932, 0.0078125
    %v946 = vmul.f32 %v934, 0.0078125
    %v947 = vmul.f32 %v936, 0.0078125
    %v948 = vmul.f32 %v938, 0.0078125
    %v949 = vmul.f32 %v940, 0.0078125
    %v950 = vmul.f32 %v942, 0.0078125
    %v951 = vmul.f32 %v911, %v911
    %v952 = vmul.f32 %v912, %v912
    %v953 = vmul.f32 %v913, %v913
    %v954 = vmul.f32 %v914, %v914
    %v955 = vmul.f32 %v915, %v915
    %v956 = vmul.f32 %v916, %v916
    %v957 = vmul.f32 %v917, %v917
    %v958 = vmul.f32 %v918, %v918
    %v959 = vsub.f32 %v943, %v951
    %v960 = vsub.f32 %v944, %v952
    %v961 = vsub.f32 %v945, %v953
    %v962 = vsub.f32 %v946, %v954
    %v963 = vsub.f32 %v947, %v955
    %v964 = vsub.f32 %v948, %v956
    %v965 = vsub.f32 %v949, %v957
    %v966 = vsub.f32 %v950, %v958
    %v967 = vadd.f32 %v959, 1e-05
    %v968 = vadd.f32 %v960, 1e-05
    %v969 = vadd.f32 %v961, 1e-05
    %v970 = vadd.f32 %v962, 1e-05
    %v971 = vadd.f32 %v963, 1e-05
    %v972 = vadd.f32 %v964, 1e-05
    %v973 = vadd.f32 %v965, 1e-05
    %v974 = vadd.f32 %v966, 1e-05
    %v975 = vrsqrt.pop %v967
    %v976 = vrsqrt.pop %v968
    %v977 = vrsqrt.pop %v969
    %v978 = vrsqrt.pop %v970
    %v979 = vrsqrt.pop %v971
    %v980 = vrsqrt.pop %v972
    %v981 = vrsqrt.pop %v973
    %v982 = vrsqrt.pop %v974
    %v983 = vsub.f32 %v887, %v911
    %v984 = vsub.f32 %v888, %v912
    %v985 = vsub.f32 %v889, %v913
    %v986 = vsub.f32 %v890, %v914
    %v987 = vsub.f32 %v891, %v915
    %v988 = vsub.f32 %v892, %v916
    %v989 = vsub.f32 %v893, %v917
    %v990 = vsub.f32 %v894, %v918
    %v991 = vmul.f32 %v983, %v975
    %v992 = vmul.f32 %v984, %v976
    %v993 = vmul.f32 %v985, %v977
    %v994 = vmul.f32 %v986, %v978
    %v995 = vmul.f32 %v987, %v979
    %v996 = vmul.f32 %v988, %v980
    %v997 = vmul.f32 %v989, %v981
    %v998 = vmul.f32 %v990, %v982
    %v999 = vlaneseq
    %v1000 = vshrl.u32 %v999, 7
    %v1001 = vsub.s32 0, %v1000
    %v1002 = vrot.slane %v32, %v1001
    %v1003 = vmul.f32 %v991, %v1002
    %v1004 = vmul.f32 %v992, %v1002
    %v1005 = vmul.f32 %v993, %v1002
    %v1006 = vmul.f32 %v994, %v1002
    %v1007 = vmul.f32 %v995, %v1002
    %v1008 = vmul.f32 %v996, %v1002
    %v1009 = vmul.f32 %v997, %v1002
    %v1010 = vmul.f32 %v998, %v1002
    %v1011 = vlaneseq
    %v1012 = vshrl.u32 %v1011, 7
    %v1013 = vsub.s32 0, %v1012
    %v1014 = vrot.slane %v33, %v1013
    %v1015 = vadd.f32 %v1003, %v1014
    %v1016 = vadd.f32 %v1004, %v1014
    %v1017 = vadd.f32 %v1005, %v1014
    %v1018 = vadd.f32 %v1006, %v1014
    %v1019 = vadd.f32 %v1007, %v1014
    %v1020 = vadd.f32 %v1008, %v1014
    %v1021 = vadd.f32 %v1009, %v1014
    %v1022 = vadd.f32 %v1010, %v1014
    %1023 = vst [vmem:[#allocation2] sm:$0xff] %v1015
    %1024 = vst [vmem:[#allocation2 + $0x8] sm:$0xff] %v1016
    %1025 = vst [vmem:[#allocation2 + $0x10] sm:$0xff] %v1017
    %1026 = vst [vmem:[#allocation2 + $0x18] sm:$0xff] %v1018
    %1027 = vst [vmem:[#allocation2 + $0x20] sm:$0xff] %v1019
    %1028 = vst [vmem:[#allocation2 + $0x28] sm:$0xff] %v1020
    %1029 = vst [vmem:[#allocation2 + $0x30] sm:$0xff] %v1021
    %1030 = vst [vmem:[#allocation2 + $0x38] sm:$0xff] %v1022
    // Predicated region
    $region26: #{tpu_custom_call.1} parent=1 // pred_check
      _
    $region27: #{tpu_custom_call.1} parent=1 // pred_check_branch
      %1032 = sbr.rel (0) target = $region29
    $region28: #{tpu_custom_call.1} parent=1 // pred_region
      %s1034 = ssub.s32 1024, 1024
      %1035 = vsyncadd [#allocation3], %s1034
      %s1036 = sshll.u32 [#allocation2], 4
      %s1037 = int_to_ptr.vmem [resolvable:$true] %s1036
      %1042 = dma.vmem_to_hbm [thread:$0]  %s1037, 1024, %s6, [#allocation3], 128, 128, 8
    $region29: #{tpu_custom_call.1} parent=1 // pred_fallthru
      _
    // Predicated region
    $region30: #{tpu_custom_call.1} parent=1 // pred_check
      _
    $region31: #{tpu_custom_call.1} parent=1 // pred_check_branch
      %1044 = sbr.rel (0) target = $region33
    $region32: #{tpu_custom_call.1} parent=1 // pred_region
      %1045 = dma.done [#allocation3], 1024
    $region33: #{tpu_custom_call.1} parent=1 // pred_fallthru
      _
    %1046 = vsyncpa [#allocation3], 1

</llo_original>
